<compile_context>
chip_gen: v7x
topology: tpu7x:2x2x1
jax: 0.10.0
libtpu: 0.0.40
codegen_flags: <defaults>
</compile_context>

<pallas_src>
import functools
import math

import jax
import jax.numpy as jnp
from jax.experimental import pallas as pl
from jax.experimental.pallas import tpu as pltpu


def _make_pe(max_len: int, dim: int) -> jnp.ndarray:
    """Deterministic sinusoidal table, identical to the PyTorch __init__."""
    position = jnp.arange(max_len, dtype=jnp.float32)[:, None]          # (L, 1)
    div_term = jnp.exp(
        jnp.arange(0, dim, 2, dtype=jnp.float32) * -(math.log(10000.0) / dim)
    )                                                                   # (D/2,)
    angles = position * div_term[None, :]                               # (L, D/2)
    pe = jnp.zeros((max_len, dim), dtype=jnp.float32)
    pe = pe.at[:, 0::2].set(jnp.sin(angles))
    pe = pe.at[:, 1::2].set(jnp.cos(angles))
    return pe                                                           # (L, D)


# ---------------------------------------------------------------------------
# Kernels.  The same bodies serve both layouts:
#   sequence path: emb (B, tF),      pe (1, tF)     -> broadcast over batch
#   step path:     emb (B, tS, D),   pe (1, 1, D)   -> broadcast over B, tS
# Broadcasts are along leading dims only (lane dim matches) -> free on VPU.
# ---------------------------------------------------------------------------
def _pe_kernel(emb_ref, pe_ref, out_ref, *, scale):
    x = emb_ref[...].astype(jnp.float32) * scale + pe_ref[...].astype(jnp.float32)
    out_ref[...] = x.astype(out_ref.dtype)


def _pe_kernel_add(emb_ref, add_ref, pe_ref, out_ref, *, scale):
    x = (emb_ref[...].astype(jnp.float32) * scale
         + add_ref[...].astype(jnp.float32)
         + pe_ref[...].astype(jnp.float32))
    out_ref[...] = x.astype(out_ref.dtype)


# ---------------------------------------------------------------------------
# Tile selection
# ---------------------------------------------------------------------------
def _pick_flat_tile(B, F, itemsize, target_bytes):
    """Flat-axis tile: multiple of 128 (lane-dense), ~target_bytes per stream,
    and >= 2 grid tiles whenever possible (v7x megacore)."""
    if F <= 128:
        return F                                   # equals full dim -> allowed
    budget = max(128, (target_bytes // max(1, B * itemsize)) // 128 * 128)
    cap = F if F % 128 == 0 else (F // 128) * 128  # ragged last tile otherwise
    tF = min(budget, cap)
    if tF == F and F >= 256:                       # keep >=2 parallel tiles
        tF = ((F // 2 + 127) // 128) * 128
    return tF


def _pick_seq_tile(B, S, D, itemsize, target_bytes):
    """Step-path sequence tile: packed-sublane multiple for the dtype."""
    sub = {4: 8, 2: 16, 1: 32}.get(itemsize, 8)
    if S <= sub:
        return S                                   # equals full dim -> allowed
    budget = max(sub, (target_bytes // max(1, B * D * itemsize)) // sub * sub)
    cap = S if S % sub == 0 else (S // sub) * sub
    tS = min(budget, cap)
    if tS == S and S >= 2 * sub:                   # keep >=2 parallel tiles
        tS = ((S // 2 + sub - 1) // sub) * sub
    return tS


# ---------------------------------------------------------------------------
# Wrapper
# ---------------------------------------------------------------------------
def positional_encoding(emb, pe_table, *, dim, add_emb=None, step=None,
                        target_tile_bytes=3 << 20):
    """emb: (B, S, D);  pe_table: (max_len, D) float32.

    Matches PositionalEncoding.forward (dropout = identity / eval mode).
    `step` must be a static Python int; `if step:` matches PyTorch truthiness
    (step=0 takes the sequence path).
    """
    B, S, D = emb.shape
    assert D == dim
    if add_emb is not None:
        assert add_emb.shape == emb.shape
    max_len = pe_table.shape[0]
    scale = float(math.sqrt(dim))
    itemsize = jnp.dtype(emb.dtype).itemsize
    pe_itemsize = jnp.dtype(pe_table.dtype).itemsize

    if step:
        # Decoder single-step: one pe row added to every position.  Pass the
        # row as a tiny (1, 1, D) block with a constant index_map (no (S, D)
        # broadcast materialized in HBM); broadcast happens in-kernel.
        pe_arr = pe_table[step][None, None, :]                    # (1, 1, D)
        tS = _pick_seq_tile(B, S, D, itemsize, target_tile_bytes)
        grid = (pl.cdiv(S, tS),)
        emb_spec = pl.BlockSpec((B, tS, D), lambda s: (0, s, 0))
        pe_spec = pl.BlockSpec((1, 1, D), lambda s: (0, 0, 0))
        emb_arg = emb
        add_arg = add_emb
        out_shape = jax.ShapeDtypeStruct((B, S, D), emb.dtype)
        big_tile_bytes = B * tS * D * itemsize
        pe_tile_bytes = D * pe_itemsize
    else:
        if S > max_len:
            raise ValueError(f"sequence length {S} exceeds pe table {max_len}")
        # Lane-dense sequence path: flatten (S, D) -> F so the last (lane) dim
        # of every block is a large multiple of 128 even when D < 128.
        F = S * D
        tF = _pick_flat_tile(B, F, itemsize, target_tile_bytes)
        grid = (pl.cdiv(F, tF),)
        emb_arg = emb.reshape(B, F)                               # free view
        add_arg = None if add_emb is None else add_emb.reshape(B, F)
        if tF % 128 == 0:
            # Window the FULL table via the BlockSpec (reshape is free,
            # pe_flat[k] == pe[k // D, k % D] for all k < F).
            pe_arr = pe_table.reshape(1, max_len * D)
        else:
            # Tiny F (< 128): block must span the whole array; slice is tiny.
            pe_arr = pe_table[:S].reshape(1, F)
        emb_spec = pl.BlockSpec((B, tF), lambda j: (0, j))
        pe_spec = pl.BlockSpec((1, tF), lambda j: (0, j))
        out_shape = jax.ShapeDtypeStruct((B, F), emb.dtype)
        big_tile_bytes = B * tF * itemsize
        pe_tile_bytes = tF * pe_itemsize

    out_spec = emb_spec
    if add_emb is None:
        kernel = functools.partial(_pe_kernel, scale=scale)
        in_specs = [emb_spec, pe_spec]
        args = (emb_arg, pe_arr)
        n_big = 2                                   # emb, out
    else:
        kernel = functools.partial(_pe_kernel_add, scale=scale)
        in_specs = [emb_spec, emb_spec, pe_spec]
        args = (emb_arg, add_arg, pe_arr)
        n_big = 3                                   # emb, add, out

    # Double-buffered footprint, with headroom, capped well below v7x's 64 MiB.
    need = 2 * (n_big * big_tile_bytes + pe_tile_bytes)
    vmem_limit = int(min(48 << 20, max(16 << 20, 2 * need)))

    out = pl.pallas_call(
        kernel,
        out_shape=out_shape,
        grid=grid,
        in_specs=in_specs,
        out_specs=out_spec,
        compiler_params=pltpu.CompilerParams(
            dimension_semantics=("parallel",),
            vmem_limit_bytes=vmem_limit,
        ),
    )(*args)
    return out.reshape(B, S, D)


# ---------------------------------------------------------------------------
# Reference (plain JAX) for sanity check
# ---------------------------------------------------------------------------
def positional_encoding_ref(emb, pe_table, *, dim, add_emb=None, step=None):
    out = emb.astype(jnp.float32) * math.sqrt(dim)
    if add_emb is not None:
        out = out + add_emb.astype(jnp.float32)
    if step:
        out = out + pe_table[step][None, None, :]
    else:
        out = out + pe_table[None, : emb.shape[1], :]
    return out.astype(emb.dtype)


if __name__ == "__main__":
    key = jax.random.PRNGKey(0)

    # Small shapes consistent with the module: batch=2, seq=8, hidden=32.
    B, S, D = 2, 8, 32
    max_len = 64  # small synthetic table (module default is 5000)

    k1, k2, k3, k4 = jax.random.split(key, 4)
    emb = jax.random.normal(k1, (B, S, D), dtype=jnp.float32)
    add_emb = jax.random.normal(k2, (B, S, D), dtype=jnp.float32)
    pe_table = _make_pe(max_len, D)

    # 1. basic sequence path (lane-dense flat tiling, grid = 2).
    out = jax.block_until_ready(positional_encoding(emb, pe_table, dim=D))
    ref = positional_encoding_ref(emb, pe_table, dim=D)
    assert jnp.allclose(out, ref, atol=1e-5, rtol=1e-5)

    # 2. add_emb path.
    out2 = jax.block_until_ready(
        positional_encoding(emb, pe_table, dim=D, add_emb=add_emb))
    ref2 = positional_encoding_ref(emb, pe_table, dim=D, add_emb=add_emb)
    assert jnp.allclose(out2, ref2, atol=1e-5, rtol=1e-5)

    # 3. larger lane-dense case exercising multiple flat tiles (grid = 4).
    B2, S2, D2, L2 = 2, 256, 128, 512
    emb_l = jax.random.normal(k3, (B2, S2, D2), dtype=jnp.float32)
    pe_l = _make_pe(L2, D2)
    out3 = jax.block_until_ready(
        positional_encoding(emb_l, pe_l, dim=D2, target_tile_bytes=64 << 10))
    ref3 = positional_encoding_ref(emb_l, pe_l, dim=D2)
    assert jnp.allclose(out3, ref3, atol=1e-4, rtol=1e-5)

    # 4. ragged sequence length (F = 320 not a multiple of the 256 tile).
    B4, S4 = 2, 10
    emb_r = jax.random.normal(k4, (B4, S4, D), dtype=jnp.float32)
    out4 = jax.block_until_ready(positional_encoding(emb_r, pe_table, dim=D))
    ref4 = positional_encoding_ref(emb_r, pe_table, dim=D)
    assert jnp.allclose(out4, ref4, atol=1e-5, rtol=1e-5)

    # 5. decoder single-step path (step truthy), no broadcast materialized.
    out5 = jax.block_until_ready(
        positional_encoding(emb, pe_table, dim=D, step=3))
    ref5 = positional_encoding_ref(emb, pe_table, dim=D, step=3)
    assert jnp.allclose(out5, ref5, atol=1e-5, rtol=1e-5)

    # 6. bf16 input (f32 accumulation inside the kernel, cast on store).
    emb_b = emb.astype(jnp.bfloat16)
    out6 = jax.block_until_ready(positional_encoding(emb_b, pe_table, dim=D))
    ref6 = positional_encoding_ref(emb_b, pe_table, dim=D)
    assert jnp.allclose(out6.astype(jnp.float32), ref6.astype(jnp.float32),
                        atol=1e-2, rtol=1e-2)

    print("KERNEL_OK")
</pallas_src>

<mosaic_0001>
module attributes {stable_mosaic.version = 11 : i64} {
  func.func @_pe_kernel(%arg0: i32, %arg1: memref<2x128xf32, #tpu.memory_space<vmem>>, %arg2: memref<1x128xf32, #tpu.memory_space<vmem>>, %arg3: memref<2x128xf32, #tpu.memory_space<vmem>>) attributes {dimension_semantics = [#tpu.dimension_semantics<parallel>], iteration_bounds = array<i64: 2>, scalar_prefetch = 0 : i64, scratch_operands = 0 : i64, tpu.core_type = #tpu.core_type<tc>, window_params = [{transform_indices = @transform_0, window_bounds = array<i64: 2, 128>}, {transform_indices = @transform_1, window_bounds = array<i64: 1, 128>}, {transform_indices = @transform_2, window_bounds = array<i64: 2, 128>}]} {
    %c0 = arith.constant 0 : index
    %c0_0 = arith.constant 0 : index
    %0 = vector.load %arg1[%c0, %c0_0] : memref<2x128xf32, #tpu.memory_space<vmem>>, vector<2x128xf32>
    %cst = arith.constant 5.65685415 : f32
    %1 = vector.broadcast %cst : f32 to vector<2x128xf32>
    %2 = arith.mulf %0, %1 : vector<2x128xf32>
    %c0_1 = arith.constant 0 : index
    %c0_2 = arith.constant 0 : index
    %3 = vector.load %arg2[%c0_1, %c0_2] : memref<1x128xf32, #tpu.memory_space<vmem>>, vector<1x128xf32>
    %4 = vector.broadcast %3 : vector<1x128xf32> to vector<2x128xf32>
    %5 = arith.addf %2, %4 : vector<2x128xf32>
    %c0_3 = arith.constant 0 : index
    %c0_4 = arith.constant 0 : index
    %6 = vector.load %arg3[%c0_3, %c0_4] : memref<2x128xf32, #tpu.memory_space<vmem>>, vector<2x128xf32>
    tpu.vector_store %arg3[%c0_3, %c0_4], %5 {strides = array<i32>} : memref<2x128xf32, #tpu.memory_space<vmem>>, vector<2x128xf32>,
    return
  }
  func.func @transform_0(%arg0: i32) -> (i32, i32) {
    %c0_i32 = arith.constant 0 : i32
    %c0_i32_0 = arith.constant 0 : i32
    return %c0_i32, %arg0 : i32, i32
  }
  func.func @transform_1(%arg0: i32) -> (i32, i32) {
    %c0_i32 = arith.constant 0 : i32
    %c0_i32_0 = arith.constant 0 : i32
    return %c0_i32, %arg0 : i32, i32
  }
  func.func @transform_2(%arg0: i32) -> (i32, i32) {
    %c0_i32 = arith.constant 0 : i32
    %c0_i32_0 = arith.constant 0 : i32
    return %c0_i32, %arg0 : i32, i32
  }
}

</mosaic_0001>

<llo_original>
// kernel: tpu_custom_call.1
$region0: #{tpu_custom_call.1}
  #allocation0 [shape = 'u32[]', space=smem, size = 0x4, offset = 0x4, fixed_abs, tag = 'smem constant byte address 0x4 - core index']
  #allocation1 [shape = 'u32[144,128]{1,0:T(1,128)}', space=vmem, size = 0x12000, scoped, tag = 'internal scratch']
  %s0 = inlined_call_operand.hbm [shape: f32[2,256], index: 0, kind: input, shape index: {}]
  %s1 = inlined_call_operand.hbm [shape: f32[1,2048], index: 1, kind: input, shape index: {}]
  %s2 = inlined_call_operand.hbm [shape: f32[2,256], index: 2, kind: output, shape index: {}]
  %s3 = sld [smem:[#allocation0]]
  $region49: #{tpu_custom_call.1} parent=0
    _
  %s5 = ssub.s32 1, %s3
  %s6 = scalar_select 0, %s5, %s3
  $region1: #{tpu_custom_call.1} parent=0
    #allocation2 [shape = 'u8[2048]{0}', space=vmem, size = 0x800, scoped, tag = 'input window, operand 0']
    #allocation3 [shape = 's32[2]{0}', space=sflag, size = 0x8, scoped, tag = 'scoped memory for tpu_custom_call.1']
    #allocation4 [shape = 's32[2]{0}', space=sflag, size = 0x8, scoped, tag = 'scoped memory for tpu_custom_call.1']
    #allocation5 [shape = 'u8[1024]{0}', space=vmem, size = 0x400, scoped, tag = 'input window, operand 1']
    #allocation6 [shape = 's32[2]{0}', space=sflag, size = 0x8, scoped, tag = 'scoped memory for tpu_custom_call.1']
    #allocation7 [shape = 'u8[2048]{0}', space=vmem, size = 0x800, scoped, tag = 'output window, operand 0']
    %7 = vsyncpa [#allocation3], 0
    %s8 = scalar_lea.sflag [#allocation3], 1
    %9 = vsyncpa %s8, 0
    %10 = vsyncpa [#allocation6], 0
    %s11 = scalar_lea.sflag [#allocation6], 1
    %12 = vsyncpa %s11, 0
    %13 = vsyncpa [#allocation4], 0
    %s14 = scalar_lea.sflag [#allocation4], 1
    %15 = vsyncpa %s14, 0
    loop: start=0, step=1, limit=4
    $region2: #{tpu_custom_call.1} parent=1 // loop_pre_header
      _
    $region3: #{tpu_custom_call.1} parent=1 // loop_header
      %s17 = sphi 0, %s21
      %p18 = scmp.ge.s32.totalorder %s17, 4
      %s27 = sphi 0, %s29
      %s30 = sphi 0, %s27
      %s31 = sphi 0, %s30
      %s47 = sphi 0, %s31
      %s53 = sphi 0, %s55
      %s56 = sphi 0, %s53
      %s57 = sphi 0, %s56
      %s73 = sphi 0, %s57
      %s79 = sphi 0, %s81
      %s82 = sphi 0, %s79
      %s83 = sphi 0, %s82
      %s99 = sphi 0, %s83
    $region4: #{tpu_custom_call.1} parent=1 // loop_header_branch
      %20 = sbr.rel (%p18) target = $region8
    $region5: #{tpu_custom_call.1} parent=1 // loop_body
      %s22 = ssub.s32 %s17, 1
      %s23 = ssub.s32 %s17, 2
      %s24 = sadd.s32 %s17, 1
      %s25 = ssub.s32 %s17, %s24
      %p26 = scmp.eq.s32.totalorder %s25, 0
      %s28 = sadd.s32 %s27, 1
      %s29 = scalar_select %p26, %s27, %s28
      %p32 = pneg %p26
      %p33 = scmp.eq.s32.totalorder %s17, 1
      %p34 = por %p32, %p33
      %p35 = scmp.ne.s32.totalorder %s27, %s30
      %p36 = scmp.eq.s32.totalorder %s17, 0
      %p37 = por %p35, %p36
      %p38 = scmp.ne.s32.totalorder %s27, %s30
      %p39 = scmp.eq.s32.totalorder %s22, 1
      %p40 = por %p38, %p39
      %p41 = scmp.ne.s32.totalorder %s30, %s31
      %p42 = scmp.eq.s32.totalorder %s22, 0
      %p43 = por %p41, %p42
      %p44 = scmp.ne.s32.totalorder %s30, %s31
      %p45 = scmp.eq.s32.totalorder %s23, 1
      %p46 = por %p44, %p45
      %p48 = scmp.ne.s32.totalorder %s31, %s47
      %p49 = scmp.eq.s32.totalorder %s23, 0
      %p50 = por %p48, %p49
      %s51 = ssub.s32 %s17, %s24
      %p52 = scmp.eq.s32.totalorder %s51, 0
      %s54 = sadd.s32 %s53, 1
      %s55 = scalar_select %p52, %s53, %s54
      %p58 = pneg %p52
      %p59 = scmp.eq.s32.totalorder %s17, 1
      %p60 = por %p58, %p59
      %p61 = scmp.ne.s32.totalorder %s53, %s56
      %p62 = scmp.eq.s32.totalorder %s17, 0
      %p63 = por %p61, %p62
      %p64 = scmp.ne.s32.totalorder %s53, %s56
      %p65 = scmp.eq.s32.totalorder %s22, 1
      %p66 = por %p64, %p65
      %p67 = scmp.ne.s32.totalorder %s56, %s57
      %p68 = scmp.eq.s32.totalorder %s22, 0
      %p69 = por %p67, %p68
      %p70 = scmp.ne.s32.totalorder %s56, %s57
      %p71 = scmp.eq.s32.totalorder %s23, 1
      %p72 = por %p70, %p71
      %p74 = scmp.ne.s32.totalorder %s57, %s73
      %p75 = scmp.eq.s32.totalorder %s23, 0
      %p76 = por %p74, %p75
      %s77 = ssub.s32 %s17, %s24
      %p78 = scmp.eq.s32.totalorder %s77, 0
      %s80 = sadd.s32 %s79, 1
      %s81 = scalar_select %p78, %s79, %s80
      %p84 = pneg %p78
      %p85 = scmp.eq.s32.totalorder %s17, 1
      %p86 = por %p84, %p85
      %p87 = scmp.ne.s32.totalorder %s79, %s82
      %p88 = scmp.eq.s32.totalorder %s17, 0
      %p89 = por %p87, %p88
      %p90 = scmp.ne.s32.totalorder %s79, %s82
      %p91 = scmp.eq.s32.totalorder %s22, 1
      %p92 = por %p90, %p91
      %p93 = scmp.ne.s32.totalorder %s82, %s83
      %p94 = scmp.eq.s32.totalorder %s22, 0
      %p95 = por %p93, %p94
      %p96 = scmp.ne.s32.totalorder %s82, %s83
      %p97 = scmp.eq.s32.totalorder %s23, 1
      %p98 = por %p96, %p97
      %p100 = scmp.ne.s32.totalorder %s83, %s99
      %p101 = scmp.eq.s32.totalorder %s23, 0
      %p102 = por %p100, %p101
      %p103 = scmp.le.s32.totalorder 1, %s17
      %p104 = scmp.lt.s32.totalorder %s17, 3
      %p105 = pnand %p103, %p104
      %p106 = pneg %p105
      // Predicated region
      $region9: #{tpu_custom_call.1} parent=5 // pred_check
        _
      $region10: #{tpu_custom_call.1} parent=5 // pred_check_branch
        %108 = sbr.rel (%p105) target = $region12
      $region11: #{tpu_custom_call.1} parent=5 // pred_region
        %s109 = ssub.s32 %s17, 1
      $region12: #{tpu_custom_call.1} parent=5 // pred_fallthru
        _
      %p110 = scmp.lt.s32.totalorder %s17, 2
      // Predicated region
      $region13: #{tpu_custom_call.1} parent=5 // pred_check
        %p111 = pneg %p110
      $region14: #{tpu_custom_call.1} parent=5 // pred_check_branch
        %113 = sbr.rel (%p111) target = $region16
      $region15: #{tpu_custom_call.1} parent=5 // pred_region
        // Predicated region
        $region17: #{tpu_custom_call.1} parent=15 // pred_check
          %p114 = pneg %p37
        $region18: #{tpu_custom_call.1} parent=15 // pred_check_branch
          %116 = sbr.rel (%p114) target = $region20
        $region19: #{tpu_custom_call.1} parent=15 // pred_region
          %s117 = sand.u32 %s27, 1
          %s118 = scalar_lea.sflag [#allocation3], %s117
          %s119 = sand.u32 %s27, 1
          %s120 = smul.addr %s119, 2
          %s121 = scalar_lea.vmem [#allocation2], %s120
          %s123 = ssub.s32 32, 32
          %124 = vsyncadd %s118, %s123
          %s125 = smul.addr %s17, 32
          %s126 = scalar_lea.hbm %s0, %s125
          %s128 = sshll.u32 %s121, 4
          %s129 = int_to_ptr.vmem [resolvable:$true] %s128
          %131 = dma.hbm_to_vmem [thread:$0]  %s126, 32, %s129, %s118
        $region20: #{tpu_custom_call.1} parent=15 // pred_fallthru
          _
        // Predicated region
        $region21: #{tpu_custom_call.1} parent=15 // pred_check
          %p132 = pneg %p63
        $region22: #{tpu_custom_call.1} parent=15 // pred_check_branch
          %134 = sbr.rel (%p132) target = $region24
        $region23: #{tpu_custom_call.1} parent=15 // pred_region
          %s135 = sand.u32 %s53, 1
          %s136 = scalar_lea.sflag [#allocation6], %s135
          %s137 = sand.u32 %s53, 1
          %s138 = scalar_lea.vmem [#allocation5], %s137
          %s140 = ssub.s32 16, 16
          %141 = vsyncadd %s136, %s140
          %s142 = smul.addr %s17, 16
          %s143 = scalar_lea.hbm %s1, %s142
          %s145 = sshll.u32 %s138, 4
          %s146 = int_to_ptr.vmem [resolvable:$true] %s145
          %148 = dma.hbm_to_vmem [thread:$0]  %s143, 16, %s146, %s136
        $region24: #{tpu_custom_call.1} parent=15 // pred_fallthru
          _
      $region16: #{tpu_custom_call.1} parent=5 // pred_fallthru
        _
      %p149 = scmp.le.s32.totalorder 1, %s17
      %p150 = scmp.lt.s32.totalorder %s17, 3
      %p151 = pnand %p149, %p150
      %p152 = pneg %p151
      // Predicated region
      $region25: #{tpu_custom_call.1} parent=5 // pred_check
        _
      $region26: #{tpu_custom_call.1} parent=5 // pred_check_branch
        %154 = sbr.rel (%p151) target = $region28
      $region27: #{tpu_custom_call.1} parent=5 // pred_region
        %s155 = ssub.s32 %s17, 1
        %s156 = sand.u32 %s30, 1
        %s157 = scalar_lea.sflag [#allocation3], %s156
        %s158 = sand.u32 %s30, 1
        %s159 = smul.addr %s158, 2
        %s160 = scalar_lea.vmem [#allocation2], %s159
        // Predicated region
        $region29: #{tpu_custom_call.1} parent=27 // pred_check
          %p161 = pneg %p43
        $region30: #{tpu_custom_call.1} parent=27 // pred_check_branch
          %163 = sbr.rel (%p161) target = $region32
        $region31: #{tpu_custom_call.1} parent=27 // pred_region
          %164 = dma.done %s157, 32
        $region32: #{tpu_custom_call.1} parent=27 // pred_fallthru
          _
        %s165 = sand.u32 %s56, 1
        %s166 = scalar_lea.sflag [#allocation6], %s165
        %s167 = sand.u32 %s56, 1
        %s168 = scalar_lea.vmem [#allocation5], %s167
        // Predicated region
        $region33: #{tpu_custom_call.1} parent=27 // pred_check
          %p169 = pneg %p69
        $region34: #{tpu_custom_call.1} parent=27 // pred_check_branch
          %171 = sbr.rel (%p169) target = $region36
        $region35: #{tpu_custom_call.1} parent=27 // pred_region
          %172 = dma.done %s166, 16
        $region36: #{tpu_custom_call.1} parent=27 // pred_fallthru
          _
        %s173 = sand.u32 %s30, 1
        %s174 = scalar_lea.sflag [#allocation3], %s173
        %s175 = sand.u32 %s30, 1
        %s176 = smul.addr %s175, 2
        %s177 = scalar_lea.vmem [#allocation2], %s176
        %p178 = pneg %p43
        %p179 = pneg %p40
        %s180 = sand.u32 %s56, 1
        %s181 = scalar_lea.sflag [#allocation6], %s180
        %s182 = sand.u32 %s56, 1
        %s183 = scalar_lea.vmem [#allocation5], %s182
        %p184 = pneg %p69
        %p185 = pneg %p66
        %p186 = pneg %p95
        %p187 = pneg %p92
        %s188 = sand.u32 %s82, 1
        %s189 = scalar_lea.sflag [#allocation4], %s188
        %s190 = sand.u32 %s82, 1
        %s191 = smul.addr %s190, 2
        %s192 = scalar_lea.vmem [#allocation7], %s191
        %v193 = vld [vmem:[%s160] sm:$0x3]
        %v194 = vmul.f32 %v193, 5.656854
        %v195 = vld [vmem:[%s168] sm:$0x1]
        %v197 = vlaneseq
        %v198 = vshrl.u32 %v197, 7
        %v199 = vsub.s32 0, %v198
        %v200 = vrot.slane %v195, %v199
        %v202 = vadd.f32 %v194, %v200
        %203 = vst [vmem:[%s192] sm:$0x3] %v202
        %s204 = sand.u32 %s82, 1
        %s205 = scalar_lea.sflag [#allocation4], %s204
        %s206 = sand.u32 %s82, 1
        %s207 = smul.addr %s206, 2
        %s208 = scalar_lea.vmem [#allocation7], %s207
        // Predicated region
        $region37: #{tpu_custom_call.1} parent=27 // pred_check
          %p209 = pneg %p92
        $region38: #{tpu_custom_call.1} parent=27 // pred_check_branch
          %211 = sbr.rel (%p209) target = $region40
        $region39: #{tpu_custom_call.1} parent=27 // pred_region
          %s213 = ssub.s32 32, 32
          %214 = vsyncadd %s205, %s213
          %s215 = smul.addr %s22, 32
          %s216 = scalar_lea.hbm %s2, %s215
          %s218 = sshll.u32 %s208, 4
          %s219 = int_to_ptr.vmem [resolvable:$true] %s218
          %221 = dma.vmem_to_hbm [thread:$0]  %s219, 32, %s216, %s205
        $region40: #{tpu_custom_call.1} parent=27 // pred_fallthru
          _
      $region28: #{tpu_custom_call.1} parent=5 // pred_fallthru
        _
      %p222 = scmp.le.s32.totalorder 2, %s17
      // Predicated region
      $region41: #{tpu_custom_call.1} parent=5 // pred_check
        %p223 = pneg %p222
      $region42: #{tpu_custom_call.1} parent=5 // pred_check_branch
        %225 = sbr.rel (%p223) target = $region44
      $region43: #{tpu_custom_call.1} parent=5 // pred_region
        %s226 = ssub.s32 %s17, 2
        // Predicated region
        $region45: #{tpu_custom_call.1} parent=43 // pred_check
          %p227 = pneg %p98
        $region46: #{tpu_custom_call.1} parent=43 // pred_check_branch
          %229 = sbr.rel (%p227) target = $region48
        $region47: #{tpu_custom_call.1} parent=43 // pred_region
          %s230 = sand.u32 %s83, 1
          %s231 = scalar_lea.sflag [#allocation4], %s230
          %s232 = sand.u32 %s83, 1
          %s233 = smul.addr %s232, 2
          %s234 = scalar_lea.vmem [#allocation7], %s233
          %235 = dma.done %s231, 32
        $region48: #{tpu_custom_call.1} parent=43 // pred_fallthru
          _
      $region44: #{tpu_custom_call.1} parent=5 // pred_fallthru
        _
    $region6: #{tpu_custom_call.1} parent=1 // loop_footer
      %s21 = sadd.s32 1, %s17
    $region7: #{tpu_custom_call.1} parent=1 // loop_footer_branch
      %16 = sbr.rel target = $region3
    $region8: #{tpu_custom_call.1} parent=1 // loop_exit
      _
    %236 = vsyncpa [#allocation3], 1
    %s237 = scalar_lea.sflag [#allocation3], 1
    %238 = vsyncpa %s237, 1
    %239 = vsyncpa [#allocation6], 1
    %s240 = scalar_lea.sflag [#allocation6], 1
    %241 = vsyncpa %s240, 1
    %242 = vsyncpa [#allocation4], 1
    %s243 = scalar_lea.sflag [#allocation4], 1
    %244 = vsyncpa %s243, 1

</llo_original>
